<compile_context>
chip_gen: v5e
topology: v5e:2x2
jax: 0.10.0
libtpu: 0.0.40
codegen_flags: <defaults>
</compile_context>

<pallas_src>
import functools

import numpy as np
import jax
import jax.numpy as jnp
from jax import lax
from jax.experimental import pallas as pl
from jax.experimental.pallas import tpu as pltpu

_LANES = 128
_BLOCK_ELEMS = 256 * 1024          # ~1 MiB of f32 per input block


def _cdiv(a, b):
    return -(-a // b)


def _round_up(a, m):
    return _cdiv(a, m) * m


# ---------------------------------------------------------------------------
# Kernel
# ---------------------------------------------------------------------------

def _combined_loss_kernel(x_ref, t_ref, o_ref, acc_ref, *,
                          tr, lanes, steps, acc_rows, n_valid, needs_mask):
    """Per-shard fused BCE-with-logits + Dice partial sums.

    Grid = (num_shards ["parallel"], steps ["arbitrary"]).
    acc_ref (VMEM, f32[3, acc_rows, lanes]) holds vreg-shaped running partials:
        [0] BCE terms, [1] sigmoid(x) + targets, [2] sigmoid(x) * targets.
    At the last reduction step the raw accumulator is written to this shard's output
    block; the wrapper does the (tiny) cross-lane/shard reduction and scalar math.
    """
    c = pl.program_id(0)          # shard (parallel axis — one per TensorCore on v7x)
    i = pl.program_id(1)          # reduction step within the shard

    @pl.when(i == 0)
    def _init():
        acc_ref[...] = jnp.zeros_like(acc_ref)

    # Cast per-tile (accepts bf16 / f32 logits, f32 / int / bool targets).
    x = x_ref[...].astype(jnp.float32)
    t = t_ref[...].astype(jnp.float32)

    # One transcendental pair per element: e = exp(-|x|) is reused for both
    # softplus (BCE) and sigmoid.
    e = jnp.exp(-jnp.abs(x))
    bce = jnp.maximum(x, 0.0) - x * t + jnp.log1p(e)
    sig = jnp.where(x >= 0.0, 1.0, e) / (1.0 + e)

    if needs_mask:
        # Mask out lane padding / out-of-range rows of the (possibly clamped)
        # last block using the global flat element index.
        row = lax.broadcasted_iota(jnp.int32, (tr, lanes), 0)
        lane = lax.broadcasted_iota(jnp.int32, (tr, lanes), 1)
        base_row = (c * steps + i) * tr
        flat = (base_row + row) * lanes + lane
        valid = flat < n_valid
        zero = jnp.zeros_like(x)
        bce = jnp.where(valid, bce, zero)
        sig = jnp.where(valid, sig, zero)
        t = jnp.where(valid, t, zero)

    def fold(v):
        # (tr, lanes) -> (acc_rows, lanes) via pure VPU vreg adds (no XLU reduce).
        if tr == acc_rows:
            return v
        return v.reshape(tr // acc_rows, acc_rows, lanes).sum(axis=0)

    acc_ref[0] += fold(bce)
    acc_ref[1] += fold(sig + t)
    acc_ref[2] += fold(sig * t)

    @pl.when(i == steps - 1)
    def _finalize():
        o_ref[0] = acc_ref[...]


# ---------------------------------------------------------------------------
# Wrapper
# ---------------------------------------------------------------------------

def combined_loss(inputs, targets, *, smooth=1.0):
    """CombinedLoss.forward(inputs, targets) — returns a scalar f32 loss."""
    assert inputs.shape == targets.shape, (inputs.shape, targets.shape)
    shape = inputs.shape
    n = int(np.prod(shape))

    # ---- lane-dense 2-D working view (avoid relayout / pad copies when possible) ----
    if shape[-1] % _LANES == 0 and shape[-1] <= 4096:
        lanes = shape[-1]                       # pure collapse of leading dims: no copy
        x2 = inputs.reshape(-1, lanes)
        t2 = targets.reshape(-1, lanes)
    elif n % _LANES == 0:
        lanes = _LANES
        x2 = inputs.reshape(-1, lanes)
        t2 = targets.reshape(-1, lanes)
    else:
        lanes = _LANES                          # ragged: pad with zeros, masked in-kernel
        pad = _round_up(n, lanes) - n
        x2 = jnp.pad(inputs.reshape(-1), (0, pad)).reshape(-1, lanes)
        t2 = jnp.pad(targets.reshape(-1), (0, pad)).reshape(-1, lanes)
    rows = x2.shape[0]

    # ---- tiling: ~1 MiB blocks for big inputs, >=~8 blocks for overlap on medium ones ----
    tr_cap = max(8, (_BLOCK_ELEMS // lanes) // 8 * 8)
    if rows <= 32:
        tr = rows                               # tiny: one full-extent block
    else:
        tr = min(tr_cap, _round_up(_cdiv(rows, 8), 8))
    num_blocks = _cdiv(rows, tr)
    num_shards = 2 if num_blocks >= 8 else 1    # 2 TCs on v7x; harmless (sequential) elsewhere
    steps = _cdiv(num_blocks, num_shards)
    needs_mask = (num_shards * steps * tr * lanes) != n
    acc_rows = 8 if (tr % 8 == 0) else tr

    def in_index_map(c, i):
        b = c * steps + i
        if num_shards * steps > num_blocks:     # static: clamp only if over-coverage possible
            b = jnp.minimum(b, num_blocks - 1)  # duplicate block is fully masked in-kernel
        return (b, 0)

    def out_index_map(c, i):
        return (c, 0, 0, 0)

    kernel = functools.partial(
        _combined_loss_kernel,
        tr=tr, lanes=lanes, steps=steps, acc_rows=acc_rows,
        n_valid=n, needs_mask=needs_mask)

    parts = pl.pallas_call(
        kernel,
        out_shape=jax.ShapeDtypeStruct((num_shards, 3, acc_rows, lanes), jnp.float32),
        grid=(num_shards, steps),
        in_specs=[
            pl.BlockSpec((tr, lanes), in_index_map),
            pl.BlockSpec((tr, lanes), in_index_map),
        ],
        out_specs=pl.BlockSpec((1, 3, acc_rows, lanes), out_index_map),
        scratch_shapes=[pltpu.VMEM((3, acc_rows, lanes), jnp.float32)],
        compiler_params=pltpu.CompilerParams(
            dimension_semantics=("parallel", "arbitrary")),
    )(x2, t2)

    # Tiny epilogue (few KiB): cross-lane / cross-shard reduce + scalar loss math.
    sums = jnp.sum(parts, axis=(0, 2, 3))       # (3,) = [sum bce, sum sig + sum t, sum sig*t]
    bce_mean = sums[0] / n
    dice = (2.0 * sums[2] + smooth) / (sums[1] + smooth)
    return bce_mean + (1.0 - dice)


# ---------------------------------------------------------------------------
# Pure-JAX reference (mirrors the PyTorch module exactly)
# ---------------------------------------------------------------------------

def reference_combined_loss(inputs, targets, smooth=1.0):
    x = inputs.reshape(-1).astype(jnp.float32)
    t = targets.reshape(-1).astype(jnp.float32)
    bce = jnp.mean(jnp.maximum(x, 0.0) - x * t + jnp.log1p(jnp.exp(-jnp.abs(x))))
    s = jax.nn.sigmoid(x)
    dice = (2.0 * jnp.sum(s * t) + smooth) / (jnp.sum(s) + jnp.sum(t) + smooth)
    return bce + (1.0 - dice)


# ---------------------------------------------------------------------------
# Main
# ---------------------------------------------------------------------------

if __name__ == "__main__":
    key = jax.random.PRNGKey(0)
    k1, k2, k3, k4, k5, k6 = jax.random.split(key, 6)

    loss_fn = jax.jit(combined_loss)

    # 1) Small segmentation-style case (single block, single shard).
    inputs = jax.random.normal(k1, (2, 1, 16, 16), jnp.float32)
    targets = (jax.random.uniform(k2, (2, 1, 16, 16)) > 0.5).astype(jnp.float32)
    loss = loss_fn(inputs, targets)
    jax.block_until_ready(loss)
    ref = reference_combined_loss(inputs, targets)
    assert jnp.allclose(loss, ref, rtol=1e-4, atol=1e-5), (float(loss), float(ref))

    # 2) Larger case (multi-step reduction grid + 2-shard parallel axis, no copies/pads).
    inputs2 = jax.random.normal(k3, (2, 1, 256, 256), jnp.float32)
    targets2 = (jax.random.uniform(k4, (2, 1, 256, 256)) > 0.5).astype(jnp.float32)
    loss2 = loss_fn(inputs2, targets2)
    jax.block_until_ready(loss2)
    ref2 = reference_combined_loss(inputs2, targets2)
    assert jnp.allclose(loss2, ref2, rtol=1e-4, atol=1e-5), (float(loss2), float(ref2))

    # 3) Unaligned element count + bf16 logits (exercises in-kernel mask and per-tile cast).
    inputs3 = jax.random.normal(k5, (3, 1, 10, 10), jnp.float32).astype(jnp.bfloat16)
    targets3 = (jax.random.uniform(k6, (3, 1, 10, 10)) > 0.5).astype(jnp.float32)
    loss3 = loss_fn(inputs3, targets3)
    jax.block_until_ready(loss3)
    ref3 = reference_combined_loss(inputs3, targets3)
    assert jnp.allclose(loss3, ref3, rtol=1e-4, atol=1e-5), (float(loss3), float(ref3))

    print("KERNEL_OK")
</pallas_src>

<mosaic_0001>
module attributes {stable_mosaic.version = 11 : i64} {
  func.func @_combined_loss_kernel(%arg0: i32, %arg1: i32, %arg2: memref<4x128xf32, #tpu.memory_space<vmem>>, %arg3: memref<4x128xf32, #tpu.memory_space<vmem>>, %arg4: memref<1x3x4x128xf32, #tpu.memory_space<vmem>>, %arg5: memref<3x4x128xf32, #tpu.memory_space<vmem>>) attributes {dimension_semantics = [#tpu.dimension_semantics<parallel>, #tpu.dimension_semantics<arbitrary>], iteration_bounds = array<i64: 1, 1>, scalar_prefetch = 0 : i64, scratch_operands = 1 : i64, tpu.core_type = #tpu.core_type<tc>, window_params = [{transform_indices = @transform_0, window_bounds = array<i64: 4, 128>}, {transform_indices = @transform_1, window_bounds = array<i64: 4, 128>}, {transform_indices = @transform_2, window_bounds = array<i64: 1, 3, 4, 128>}]} {
    %c0_i32 = arith.constant 0 : i32
    %0 = arith.cmpi eq, %arg1, %c0_i32 : i32
    %1 = arith.extui %0 : i1 to i32
    %c0_i32_0 = arith.constant 0 : i32
    %2 = arith.cmpi ne, %1, %c0_i32_0 : i32
    scf.if %2 {
      %cst_26 = arith.constant 0.000000e+00 : f32
      %45 = vector.broadcast %cst_26 : f32 to vector<3x4x128xf32>
      %c0_27 = arith.constant 0 : index
      %c0_28 = arith.constant 0 : index
      %c0_29 = arith.constant 0 : index
      %46 = vector.load %arg5[%c0_27, %c0_28, %c0_29] : memref<3x4x128xf32, #tpu.memory_space<vmem>>, vector<3x4x128xf32>
      tpu.vector_store %arg5[%c0_27, %c0_28, %c0_29], %45 {strides = array<i32>} : memref<3x4x128xf32, #tpu.memory_space<vmem>>, vector<3x4x128xf32>,
    } else {
    }
    %c0 = arith.constant 0 : index
    %c0_1 = arith.constant 0 : index
    %3 = vector.load %arg2[%c0, %c0_1] : memref<4x128xf32, #tpu.memory_space<vmem>>, vector<4x128xf32>
    %c0_2 = arith.constant 0 : index
    %c0_3 = arith.constant 0 : index
    %4 = vector.load %arg3[%c0_2, %c0_3] : memref<4x128xf32, #tpu.memory_space<vmem>>, vector<4x128xf32>
    %5 = math.absf %3 : vector<4x128xf32>
    %cst = arith.constant 0.000000e+00 : f32
    %6 = vector.broadcast %cst : f32 to vector<4x128xf32>
    %7 = arith.subf %6, %5 : vector<4x128xf32>
    %8 = math.exp %7 : vector<4x128xf32>
    %cst_4 = arith.constant 0.000000e+00 : f32
    %9 = vector.broadcast %cst_4 : f32 to vector<4x128xf32>
    %10 = arith.maximumf %3, %9 : vector<4x128xf32>
    %11 = arith.mulf %3, %4 : vector<4x128xf32>
    %12 = arith.subf %10, %11 : vector<4x128xf32>
    %13 = math.log1p %8 : vector<4x128xf32>
    %14 = arith.addf %12, %13 : vector<4x128xf32>
    %cst_5 = arith.constant 0.000000e+00 : f32
    %15 = vector.broadcast %cst_5 : f32 to vector<4x128xf32>
    %16 = arith.cmpf oge, %3, %15 : vector<4x128xf32>
    %cst_6 = arith.constant 1.000000e+00 : f32
    %17 = vector.broadcast %cst_6 : f32 to vector<4x128xf32>
    %18 = arith.select %16, %17, %8 : vector<4x128xi1>, vector<4x128xf32>
    %cst_7 = arith.constant 1.000000e+00 : f32
    %19 = vector.broadcast %cst_7 : f32 to vector<4x128xf32>
    %20 = arith.addf %19, %8 : vector<4x128xf32>
    %21 = arith.divf %18, %20 : vector<4x128xf32>
    %c0_8 = arith.constant 0 : index
    %c0_9 = arith.constant 0 : index
    %c0_10 = arith.constant 0 : index
    %22 = vector.load %arg5[%c0_8, %c0_9, %c0_10] : memref<3x4x128xf32, #tpu.memory_space<vmem>>, vector<1x4x128xf32>
    %23 = vector.shape_cast %22 : vector<1x4x128xf32> to vector<4x128xf32>
    %24 = arith.addf %23, %14 : vector<4x128xf32>
    %c0_11 = arith.constant 0 : index
    %c0_12 = arith.constant 0 : index
    %c0_13 = arith.constant 0 : index
    %25 = vector.load %arg5[%c0_11, %c0_12, %c0_13] : memref<3x4x128xf32, #tpu.memory_space<vmem>>, vector<1x4x128xf32>
    %26 = vector.shape_cast %25 : vector<1x4x128xf32> to vector<4x128xf32>
    %27 = vector.shape_cast %24 : vector<4x128xf32> to vector<1x4x128xf32>
    tpu.vector_store %arg5[%c0_11, %c0_12, %c0_13], %27 {strides = array<i32>} : memref<3x4x128xf32, #tpu.memory_space<vmem>>, vector<1x4x128xf32>,
    %c1 = arith.constant 1 : index
    %c0_14 = arith.constant 0 : index
    %c0_15 = arith.constant 0 : index
    %28 = vector.load %arg5[%c1, %c0_14, %c0_15] : memref<3x4x128xf32, #tpu.memory_space<vmem>>, vector<1x4x128xf32>
    %29 = vector.shape_cast %28 : vector<1x4x128xf32> to vector<4x128xf32>
    %30 = arith.addf %21, %4 : vector<4x128xf32>
    %31 = arith.addf %29, %30 : vector<4x128xf32>
    %c1_16 = arith.constant 1 : index
    %c0_17 = arith.constant 0 : index
    %c0_18 = arith.constant 0 : index
    %32 = vector.load %arg5[%c1_16, %c0_17, %c0_18] : memref<3x4x128xf32, #tpu.memory_space<vmem>>, vector<1x4x128xf32>
    %33 = vector.shape_cast %32 : vector<1x4x128xf32> to vector<4x128xf32>
    %34 = vector.shape_cast %31 : vector<4x128xf32> to vector<1x4x128xf32>
    tpu.vector_store %arg5[%c1_16, %c0_17, %c0_18], %34 {strides = array<i32>} : memref<3x4x128xf32, #tpu.memory_space<vmem>>, vector<1x4x128xf32>,
    %c2 = arith.constant 2 : index
    %c0_19 = arith.constant 0 : index
    %c0_20 = arith.constant 0 : index
    %35 = vector.load %arg5[%c2, %c0_19, %c0_20] : memref<3x4x128xf32, #tpu.memory_space<vmem>>, vector<1x4x128xf32>
    %36 = vector.shape_cast %35 : vector<1x4x128xf32> to vector<4x128xf32>
    %37 = arith.mulf %21, %4 : vector<4x128xf32>
    %38 = arith.addf %36, %37 : vector<4x128xf32>
    %c2_21 = arith.constant 2 : index
    %c0_22 = arith.constant 0 : index
    %c0_23 = arith.constant 0 : index
    %39 = vector.load %arg5[%c2_21, %c0_22, %c0_23] : memref<3x4x128xf32, #tpu.memory_space<vmem>>, vector<1x4x128xf32>
    %40 = vector.shape_cast %39 : vector<1x4x128xf32> to vector<4x128xf32>
    %41 = vector.shape_cast %38 : vector<4x128xf32> to vector<1x4x128xf32>
    tpu.vector_store %arg5[%c2_21, %c0_22, %c0_23], %41 {strides = array<i32>} : memref<3x4x128xf32, #tpu.memory_space<vmem>>, vector<1x4x128xf32>,
    %c0_i32_24 = arith.constant 0 : i32
    %42 = arith.cmpi eq, %arg1, %c0_i32_24 : i32
    %43 = arith.extui %42 : i1 to i32
    %c0_i32_25 = arith.constant 0 : i32
    %44 = arith.cmpi ne, %43, %c0_i32_25 : i32
    scf.if %44 {
      %c0_26 = arith.constant 0 : index
      %c0_27 = arith.constant 0 : index
      %c0_28 = arith.constant 0 : index
      %45 = vector.load %arg5[%c0_26, %c0_27, %c0_28] : memref<3x4x128xf32, #tpu.memory_space<vmem>>, vector<3x4x128xf32>
      %c0_29 = arith.constant 0 : index
      %c0_30 = arith.constant 0 : index
      %c0_31 = arith.constant 0 : index
      %c0_32 = arith.constant 0 : index
      %46 = vector.load %arg4[%c0_29, %c0_30, %c0_31, %c0_32] : memref<1x3x4x128xf32, #tpu.memory_space<vmem>>, vector<1x3x4x128xf32>
      %47 = vector.shape_cast %46 : vector<1x3x4x128xf32> to vector<3x4x128xf32>
      %48 = vector.shape_cast %45 : vector<3x4x128xf32> to vector<1x3x4x128xf32>
      tpu.vector_store %arg4[%c0_29, %c0_30, %c0_31, %c0_32], %48 {strides = array<i32>} : memref<1x3x4x128xf32, #tpu.memory_space<vmem>>, vector<1x3x4x128xf32>,
    } else {
    }
    return
  }
  func.func @transform_0(%arg0: i32, %arg1: i32) -> (i32, i32) {
    %c1_i32 = arith.constant 1 : i32
    %0 = arith.muli %arg0, %c1_i32 : i32
    %1 = arith.addi %0, %arg1 : i32
    %c0_i32 = arith.constant 0 : i32
    %c0_i32_0 = arith.constant 0 : i32
    return %1, %c0_i32 : i32, i32
  }
  func.func @transform_1(%arg0: i32, %arg1: i32) -> (i32, i32) {
    %c1_i32 = arith.constant 1 : i32
    %0 = arith.muli %arg0, %c1_i32 : i32
    %1 = arith.addi %0, %arg1 : i32
    %c0_i32 = arith.constant 0 : i32
    %c0_i32_0 = arith.constant 0 : i32
    return %1, %c0_i32 : i32, i32
  }
  func.func @transform_2(%arg0: i32, %arg1: i32) -> (i32, i32, i32, i32) {
    %c0_i32 = arith.constant 0 : i32
    %c0_i32_0 = arith.constant 0 : i32
    %c0_i32_1 = arith.constant 0 : i32
    %c0_i32_2 = arith.constant 0 : i32
    return %arg0, %c0_i32, %c0_i32_0, %c0_i32_1 : i32, i32, i32, i32
  }
}

</mosaic_0001>

<llo_original>
// kernel: combined_loss.1
$region0: #{combined_loss.1}
  #allocation0 [shape = 'u32[]', space=smem, size = 0x4, offset = 0x4, fixed_abs, tag = 'smem constant byte address 0x4 - core index']
  #allocation1 [shape = 'u32[72,128]{1,0:T(1,128)}', space=vmem, size = 0x9000, scoped, tag = 'internal scratch']
  #allocation2 [shape = 'f32[3,4,128]{2,1,0:T(4,128)}', space=vmem, size = 0x1800, scoped, tag = 'scratch operand']
  %s0 = inlined_call_operand.vmem [shape: f32[4,128], index: 0, kind: input, shape index: {}]
  %s1 = inlined_call_operand.vmem [shape: f32[4,128], index: 1, kind: input, shape index: {}]
  %s2 = inlined_call_operand.vmem [shape: f32[1,3,4,128], index: 2, kind: output, shape index: {}]
  %s3 = sld [smem:[#allocation0]]
  $region26: #{combined_loss.1} parent=0
    _
  %s5 = ssub.s32 1, %s3
  %s6 = scalar_select 0, %s5, %s3
  // Predicated region
  $region2: #{combined_loss.1} parent=0 // pred_check
    _
  $region3: #{combined_loss.1} parent=0 // pred_check_branch
    %8 = sbr.rel (0) target = $region5
  $region4: #{combined_loss.1} parent=0 // pred_region
    %s9 = sadd.s32 0, 0
    %p10 = scmp.lt.s32.totalorder %s9, 0
    %s11 = scalar_select %p10, %s9, 0
    %s12 = smul.addr %s11, 4
    %s13 = scalar_lea.vmem %s0, %s12
    %s14 = sadd.s32 0, 0
  $region5: #{combined_loss.1} parent=0 // pred_fallthru
    _
  // Predicated region
  $region6: #{combined_loss.1} parent=0 // pred_check
    _
  $region7: #{combined_loss.1} parent=0 // pred_check_branch
    %16 = sbr.rel (0) target = $region9
  $region8: #{combined_loss.1} parent=0 // pred_region
    %s17 = sadd.s32 0, 0
    %p18 = scmp.lt.s32.totalorder %s17, 0
    %s19 = scalar_select %p18, %s17, 0
    %s20 = smul.addr %s19, 4
    %s21 = scalar_lea.vmem %s1, %s20
    %s22 = sadd.s32 0, 0
  $region9: #{combined_loss.1} parent=0 // pred_fallthru
    _
  %s23 = sadd.s32 0, 0
  %p24 = scmp.lt.s32.totalorder %s23, 0
  %s25 = scalar_select %p24, %s23, 0
  %s26 = smul.addr %s25, 4
  %s27 = scalar_lea.vmem %s0, %s26
  %s28 = sadd.s32 0, 0
  %p29 = scmp.lt.s32.totalorder %s28, 0
  %s30 = scalar_select %p29, %s28, 0
  %s31 = smul.addr %s30, 4
  %s32 = scalar_lea.vmem %s1, %s31
  %s33 = sadd.s32 0, 0
  %p34 = scmp.lt.s32.totalorder %s33, 0
  %s35 = scalar_select %p34, %s33, 0
  %s36 = smul.addr %s35, 4
  %s37 = scalar_lea.vmem %s0, %s36
  %s38 = sadd.s32 0, 0
  %s39 = sadd.s32 0, 0
  %p40 = scmp.lt.s32.totalorder %s39, 0
  %s41 = scalar_select %p40, %s39, 0
  %s42 = smul.addr %s41, 4
  %s43 = scalar_lea.vmem %s1, %s42
  %s44 = sadd.s32 0, 0
  %p45 = scmp.eq.s32.totalorder 0, 0
  // Predicated region
  $region10: #{combined_loss.1} parent=0 // pred_check
    %p46 = pneg %p45
  $region11: #{combined_loss.1} parent=0 // pred_check_branch
    %48 = sbr.rel (%p46) target = $region13
  $region12: #{combined_loss.1} parent=0 // pred_region
    %49 = vst [vmem:[#allocation2] sm:$0xf] 0.0
    %50 = vst [vmem:[#allocation2 + $0x4] sm:$0xf] 0.0
    %51 = vst [vmem:[#allocation2 + $0x8] sm:$0xf] 0.0
  $region13: #{combined_loss.1} parent=0 // pred_fallthru
    _
  %v52 = vld [vmem:[%s37] sm:$0xf]
  %v53 = vld [vmem:[%s43] sm:$0xf]
  %v54 = vand.u32 2147483647, %v52
  %v55 = vsub.f32 0.0, %v54
  %v56 = vmul.f32 %v55, 1.442695
  %v57 = vpow.pop %v56
  %v58 = vmax.f32 %v52, 0.0
  %v59 = vmul.f32 %v52, %v53
  %v60 = vsub.f32 %v58, %v59
  %v61 = vadd.f32 %v57, 1.0
  %v62 = vlog2.pop %v61
  %v63 = vmul.f32 %v62, 0.6931472
  %v64 = vmul.f32 -0.5, %v57
  %v65 = vadd.f32 %v64, 1.0
  %v66 = vmul.f32 %v65, %v57
  %v67 = vand.u32 2147483647, %v57
  %vm68 = vcmp.lt.f32.partialorder %v67, 0.0004427343
  %v69 = vsel %vm68, %v66, %v63
  %v70 = vadd.f32 %v60, %v69
  %vm71 = vcmp.ge.f32.partialorder %v52, 0.0
  %v72 = vsel %vm71, 1.0, %v57
  %v73 = vadd.f32 %v57, 1.0
  %v74 = vrcp.pop %v73
  %v75 = vmul.f32 %v73, %v74
  %v76 = vsub.f32 1.0, %v75
  %v77 = vmul.f32 %v74, %v76
  %v78 = vadd.f32 %v74, %v77
  %vm79 = vweird.f32 %v73
  %vm80 = vweird.f32 %v74
  %vm81 = vmor %vm79, %vm80
  %v82 = vsel %vm81, %v74, %v78
  %v83 = vand.u32 2147483647, %v73
  %vm84 = vcmp.eq.f32.partialorder %v83, 8.507059e+37
  %v85 = vand.u32 %v73, 2147483648
  %v86 = vor.u32 1.1754944e-38, %v85
  %v87 = vsel %vm84, %v86, %v82
  %v88 = vmul.f32 %v72, %v87
  %v89 = vld [vmem:[#allocation2] sm:$0xf]
  %v90 = vadd.f32 %v89, %v70
  %91 = vst [vmem:[#allocation2] sm:$0xf] %v90
  %s92 = scalar_lea.vmem [#allocation2], 4
  %v93 = vld [vmem:[%s92] sm:$0xf]
  %v94 = vadd.f32 %v88, %v53
  %v95 = vadd.f32 %v93, %v94
  %96 = vst [vmem:[%s92] sm:$0xf] %v95
  %s97 = scalar_lea.vmem [#allocation2], 8
  %v98 = vld [vmem:[%s97] sm:$0xf]
  %v99 = vmul.f32 %v88, %v53
  %v100 = vadd.f32 %v98, %v99
  %101 = vst [vmem:[%s97] sm:$0xf] %v100
  // Predicated region
  $region14: #{combined_loss.1} parent=0 // pred_check
    %p102 = pneg %p45
  $region15: #{combined_loss.1} parent=0 // pred_check_branch
    %104 = sbr.rel (%p102) target = $region17
  $region16: #{combined_loss.1} parent=0 // pred_region
    %v105 = vld [vmem:[#allocation2] sm:$0xf]
    %v106 = vld [vmem:[#allocation2 + $0x4] sm:$0xf]
    %v107 = vld [vmem:[#allocation2 + $0x8] sm:$0xf]
    %108 = vst [vmem:[%s2] sm:$0xf] %v105
    %109 = vst [vmem:[%s2 + $0x4] sm:$0xf] %v106
    %110 = vst [vmem:[%s2 + $0x8] sm:$0xf] %v107
  $region17: #{combined_loss.1} parent=0 // pred_fallthru
    _
  // Predicated region
  $region18: #{combined_loss.1} parent=0 // pred_check
    _
  $region19: #{combined_loss.1} parent=0 // pred_check_branch
    %112 = sbr.rel (0) target = $region21
  $region20: #{combined_loss.1} parent=0 // pred_region
    _
  $region21: #{combined_loss.1} parent=0 // pred_fallthru
    _
  // Predicated region
  $region22: #{combined_loss.1} parent=0 // pred_check
    _
  $region23: #{combined_loss.1} parent=0 // pred_check_branch
    %114 = sbr.rel (0) target = $region25
  $region24: #{combined_loss.1} parent=0 // pred_region
    _
  $region25: #{combined_loss.1} parent=0 // pred_fallthru
    _

</llo_original>
